<compile_context>
chip_gen: v5e
topology: v5e:2x2
jax: 0.10.0
libtpu: 0.0.40
codegen_flags: <defaults>
</compile_context>

<pallas_src>
import functools

import jax
import jax.numpy as jnp
from jax.experimental import pallas as pl
from jax.experimental.pallas import tpu as pltpu

# Small synthetic graph sizes (consistent with a per-frame event graph).
N_NODES = 128     # nodes -> 128-lane axis inside the kernel
N_EDGES = 512
C_IN = 8          # in_channel
C_OUT = 16        # out_channel
K = 5             # GMMConv kernel_size for the two "left" convs
K_SC = 1          # shortcut GMMConv kernel_size
DIM = 1           # pseudo-coordinate dim
BN_EPS = 1e-5
GMM_EPS = 1e-15


# ----------------------------------------------------------------------------- kernel
def residual_block_kernel(xt_ref, w1_ref, at1_ref, atsc_ref, sh1_ref, shsc_ref,
                          w2_ref, at2_ref, sh2_ref, out_ref, *, nk, c_out):
    f32 = jnp.float32
    xt = xt_ref[...]                                              # [C_in, N], lane-dense

    # ---- stage 1: ONE fused transform for conv1 (K blocks + root) and shortcut (+root)
    z1 = jnp.dot(w1_ref[...], xt, preferred_element_type=f32)     # [(nk+3)*C, N]

    # conv1 aggregation: root term + sum_k Z1_k @ A1_k^T  (all [C, N], lane-dense)
    h = z1[nk * c_out:(nk + 1) * c_out, :]                        # conv1 root term
    for i in range(nk):                                           # static unroll, MXU matmuls
        h = h + jnp.dot(z1[i * c_out:(i + 1) * c_out, :], at1_ref[i],
                        preferred_element_type=f32)
    h = h + sh1_ref[...]                                          # folded conv-bias + BN shift
    h = jnp.where(h > 0, h, jnp.exp(h) - 1.0)                     # ELU

    # shortcut branch (kernel_size=1 GMMConv + BN, folded)
    sc = z1[(nk + 2) * c_out:(nk + 3) * c_out, :]                 # shortcut root term
    sc = sc + jnp.dot(z1[(nk + 1) * c_out:(nk + 2) * c_out, :], atsc_ref[0],
                      preferred_element_type=f32)
    sc = sc + shsc_ref[...]

    # ---- stage 2: conv2 (K blocks + root) on h, same fused-transform pattern
    z2 = jnp.dot(w2_ref[...], h, preferred_element_type=f32)      # [(nk+1)*C, N]
    h2 = z2[nk * c_out:(nk + 1) * c_out, :]
    for i in range(nk):
        h2 = h2 + jnp.dot(z2[i * c_out:(i + 1) * c_out, :], at2_ref[i],
                          preferred_element_type=f32)
    h2 = h2 + sh2_ref[...]

    y = h2 + sc
    out_ref[...] = jnp.where(y > 0, y, jnp.exp(y) - 1.0)          # final ELU


# ------------------------------------------------------------------- wrapper / plumbing
def dense_adjacency(src, dst, edge_attr, mu, sigma, n):
    """Gaussian-mixture edge weights + scatter into dense A_k, returned transposed.

    TODO(synk): the data-dependent edge_index scatter (graph structure -> dense
    adjacency) has no clean lane-dense Pallas equivalent; done once here in plain JAX.
    """
    diff = edge_attr[:, None, :] - mu[None, :, :]                            # [E, K, D]
    gauss = jnp.exp(jnp.sum(-0.5 * diff ** 2 / (GMM_EPS + sigma[None] ** 2), axis=-1))
    a = jnp.zeros((n, n, mu.shape[0]), jnp.float32).at[dst, src, :].add(gauss)  # A[i,j,k]
    deg = jnp.zeros((n,), jnp.float32).at[dst].add(1.0)
    a = a / jnp.maximum(deg, 1.0)[:, None, None]                  # 'mean' aggregation
    return jnp.transpose(a, (2, 1, 0))                            # [K, N, N] = A_k^T


def fold_conv_bn(conv, bn):
    """Fold inference-mode BN (scale, shift) + conv bias into the conv weights."""
    scale = bn["gamma"] / jnp.sqrt(bn["var"] + BN_EPS)            # [C_out]
    shift = bn["beta"] - bn["mean"] * scale
    c_in = conv["g"].shape[0]
    c_out = conv["root"].shape[0]
    nk = conv["mu"].shape[0]
    g = conv["g"].reshape(c_in, nk, c_out) * scale[None, None, :]
    gt = jnp.transpose(g, (1, 2, 0)).reshape(nk * c_out, c_in)    # stacked (g_k*scale)^T
    root = conv["root"] * scale[:, None]                          # [C_out, C_in]
    shift = scale * conv["bias"] + shift                          # conv bias folded in
    return gt, root, shift


def residual_block_forward(x, src, dst, edge_attr, params):
    """x: [N, C_in]. Returns the new node features [N, C_out]."""
    n, c_in = x.shape
    c_out = params["conv1"]["root"].shape[0]
    nk = params["conv1"]["mu"].shape[0]

    at1 = dense_adjacency(src, dst, edge_attr, params["conv1"]["mu"],
                          params["conv1"]["sigma"], n)
    at2 = dense_adjacency(src, dst, edge_attr, params["conv2"]["mu"],
                          params["conv2"]["sigma"], n)
    atsc = dense_adjacency(src, dst, edge_attr, params["conv_sc"]["mu"],
                           params["conv_sc"]["sigma"], n)

    gt1, root1, sh1 = fold_conv_bn(params["conv1"], params["bn1"])
    gt2, root2, sh2 = fold_conv_bn(params["conv2"], params["bn2"])
    gtsc, rootsc, shsc = fold_conv_bn(params["conv_sc"], params["bn_sc"])

    # Fused transform weights: [conv1 g (K blocks) | conv1 root | sc g | sc root]
    w1 = jnp.concatenate([gt1, root1, gtsc, rootsc], axis=0)      # [(K+3)*C_out, C_in]
    w2 = jnp.concatenate([gt2, root2], axis=0)                    # [(K+1)*C_out, C_out]

    xt = x.T                                                      # [C_in, N], nodes on lanes

    flops = 2 * (w1.shape[0] * c_in * n                           # stage-1 transform
                 + (2 * nk + 1) * c_out * n * n                   # adjacency matmuls
                 + w2.shape[0] * c_out * n)                       # stage-2 transform
    bytes_accessed = 4 * (xt.size + w1.size + w2.size + at1.size + at2.size
                          + atsc.size + 3 * c_out + c_out * n)

    kernel = functools.partial(residual_block_kernel, nk=nk, c_out=c_out)
    out_t = pl.pallas_call(
        kernel,
        out_shape=jax.ShapeDtypeStruct((c_out, n), jnp.float32),
        in_specs=[pl.BlockSpec(memory_space=pltpu.MemorySpace.VMEM)] * 9,
        out_specs=pl.BlockSpec(memory_space=pltpu.MemorySpace.VMEM),
        compiler_params=pltpu.CompilerParams(vmem_limit_bytes=16 * 1024 * 1024),
        cost_estimate=pl.CostEstimate(flops=flops, transcendentals=2 * c_out * n,
                                      bytes_accessed=bytes_accessed),
    )(xt, w1, at1, atsc,
      sh1.reshape(c_out, 1), shsc.reshape(c_out, 1),
      w2, at2, sh2.reshape(c_out, 1))
    return out_t.T                                                # [N, C_out]


# --------------------------------------------------------------------- pure-JAX reference
def _gmm_conv_ref(x, src, dst, edge_attr, p):
    n = x.shape[0]
    c_out = p["root"].shape[0]
    nk = p["mu"].shape[0]
    hi = jax.lax.Precision.HIGHEST
    xg = jnp.dot(x, p["g"], precision=hi).reshape(n, nk, c_out)
    diff = edge_attr[:, None, :] - p["mu"][None, :, :]
    gauss = jnp.exp(jnp.sum(-0.5 * diff ** 2 / (GMM_EPS + p["sigma"][None] ** 2), axis=-1))
    msg = jnp.sum(xg[src] * gauss[:, :, None], axis=1)            # [E, C_out]
    agg = jnp.zeros((n, c_out), jnp.float32).at[dst].add(msg)
    deg = jnp.zeros((n,), jnp.float32).at[dst].add(1.0)
    agg = agg / jnp.maximum(deg, 1.0)[:, None]
    return agg + jnp.dot(x, p["root"].T, precision=hi) + p["bias"]


def _bn_ref(x, p):
    return p["gamma"] * (x - p["mean"]) / jnp.sqrt(p["var"] + BN_EPS) + p["beta"]


def _elu_ref(x):
    return jnp.where(x > 0, x, jnp.exp(x) - 1.0)


def residual_block_ref(x, src, dst, edge_attr, params):
    h = _elu_ref(_bn_ref(_gmm_conv_ref(x, src, dst, edge_attr, params["conv1"]),
                         params["bn1"]))
    h = _bn_ref(_gmm_conv_ref(h, src, dst, edge_attr, params["conv2"]), params["bn2"])
    sc = _bn_ref(_gmm_conv_ref(x, src, dst, edge_attr, params["conv_sc"]), params["bn_sc"])
    return _elu_ref(h + sc)


# ------------------------------------------------------------------------- param init
def init_gmm_params(key, c_in, c_out, nk, scale=0.3):
    k1, k2, k3, k4, k5 = jax.random.split(key, 5)
    return dict(
        g=scale * jax.random.normal(k1, (c_in, c_out * nk), jnp.float32),
        mu=jax.random.normal(k2, (nk, DIM), jnp.float32),
        sigma=0.5 + jax.random.uniform(k3, (nk, DIM), jnp.float32),
        root=scale * jax.random.normal(k4, (c_out, c_in), jnp.float32),
        bias=scale * jax.random.normal(k5, (c_out,), jnp.float32),
    )


def init_bn_params(key, c):
    k1, k2, k3, k4 = jax.random.split(key, 4)
    return dict(
        gamma=0.5 + jax.random.uniform(k1, (c,), jnp.float32),
        beta=0.2 * jax.random.normal(k2, (c,), jnp.float32),
        mean=0.2 * jax.random.normal(k3, (c,), jnp.float32),
        var=0.5 + jax.random.uniform(k4, (c,), jnp.float32),
    )


if __name__ == "__main__":
    key = jax.random.PRNGKey(0)
    kx, ke1, ke2, ka, kp = jax.random.split(key, 5)

    x = jax.random.normal(kx, (N_NODES, C_IN), jnp.float32)              # node features
    src = jax.random.randint(ke1, (N_EDGES,), 0, N_NODES)                # edge_index[0]
    dst = jax.random.randint(ke2, (N_EDGES,), 0, N_NODES)                # edge_index[1]
    edge_attr = jax.random.uniform(ka, (N_EDGES, DIM), jnp.float32)      # pseudo-coords

    kc1, kb1, kc2, kb2, kcs, kbs = jax.random.split(kp, 6)
    params = {
        "conv1": init_gmm_params(kc1, C_IN, C_OUT, K),
        "bn1": init_bn_params(kb1, C_OUT),
        "conv2": init_gmm_params(kc2, C_OUT, C_OUT, K),
        "bn2": init_bn_params(kb2, C_OUT),
        "conv_sc": init_gmm_params(kcs, C_IN, C_OUT, K_SC),
        "bn_sc": init_bn_params(kbs, C_OUT),
    }

    out = jax.block_until_ready(residual_block_forward(x, src, dst, edge_attr, params))
    ref = jax.block_until_ready(residual_block_ref(x, src, dst, edge_attr, params))

    assert out.shape == (N_NODES, C_OUT), out.shape
    assert jnp.allclose(out, ref, atol=2e-3, rtol=2e-3), float(jnp.max(jnp.abs(out - ref)))
    print("KERNEL_OK")
</pallas_src>

<mosaic_0001>
module attributes {stable_mosaic.version = 11 : i64} {
  func.func @residual_block_kernel(%arg0: memref<8x128xf32, #tpu.memory_space<vmem>>, %arg1: memref<128x8xf32, #tpu.memory_space<vmem>>, %arg2: memref<5x128x128xf32, #tpu.memory_space<vmem>>, %arg3: memref<1x128x128xf32, #tpu.memory_space<vmem>>, %arg4: memref<16x1xf32, #tpu.memory_space<vmem>>, %arg5: memref<16x1xf32, #tpu.memory_space<vmem>>, %arg6: memref<96x16xf32, #tpu.memory_space<vmem>>, %arg7: memref<5x128x128xf32, #tpu.memory_space<vmem>>, %arg8: memref<16x1xf32, #tpu.memory_space<vmem>>, %arg9: memref<16x128xf32, #tpu.memory_space<vmem>>) attributes {dimension_semantics = [], scalar_prefetch = 0 : i64, scratch_operands = 0 : i64, tpu.core_type = #tpu.core_type<tc>} {
    %c0 = arith.constant 0 : index
    %c0_0 = arith.constant 0 : index
    %0 = vector.load %arg0[%c0, %c0_0] : memref<8x128xf32, #tpu.memory_space<vmem>>, vector<8x128xf32>
    %c0_1 = arith.constant 0 : index
    %c0_2 = arith.constant 0 : index
    %1 = vector.load %arg1[%c0_1, %c0_2] : memref<128x8xf32, #tpu.memory_space<vmem>>, vector<128x8xf32>
    %cst = arith.constant dense<0.000000e+00> : vector<128x128xf32>
    %2 = tpu.matmul %1, %0, %cst {dimension_numbers = #tpu.dot_dimension_numbers<[1], [0], [0], [1], [0, 0, 1, 1], [], []>} : vector<128x8xf32>, vector<8x128xf32>, vector<128x128xf32> -> vector<128x128xf32>
    %3 = vector.extract_strided_slice %2 {offsets = [80, 0], sizes = [16, 128], strides = [1, 1]} : vector<128x128xf32> to vector<16x128xf32>
    %4 = vector.extract_strided_slice %2 {offsets = [0, 0], sizes = [16, 128], strides = [1, 1]} : vector<128x128xf32> to vector<16x128xf32>
    %c0_3 = arith.constant 0 : index
    %c0_4 = arith.constant 0 : index
    %c0_5 = arith.constant 0 : index
    %5 = vector.load %arg2[%c0_3, %c0_4, %c0_5] : memref<5x128x128xf32, #tpu.memory_space<vmem>>, vector<1x128x128xf32>
    %6 = vector.shape_cast %5 : vector<1x128x128xf32> to vector<128x128xf32>
    %cst_6 = arith.constant dense<0.000000e+00> : vector<16x128xf32>
    %7 = tpu.matmul %4, %6, %cst_6 {dimension_numbers = #tpu.dot_dimension_numbers<[1], [0], [0], [1], [0, 0, 1, 1], [], []>} : vector<16x128xf32>, vector<128x128xf32>, vector<16x128xf32> -> vector<16x128xf32>
    %8 = arith.addf %3, %7 : vector<16x128xf32>
    %9 = vector.extract_strided_slice %2 {offsets = [16, 0], sizes = [16, 128], strides = [1, 1]} : vector<128x128xf32> to vector<16x128xf32>
    %c1 = arith.constant 1 : index
    %c0_7 = arith.constant 0 : index
    %c0_8 = arith.constant 0 : index
    %10 = vector.load %arg2[%c1, %c0_7, %c0_8] : memref<5x128x128xf32, #tpu.memory_space<vmem>>, vector<1x128x128xf32>
    %11 = vector.shape_cast %10 : vector<1x128x128xf32> to vector<128x128xf32>
    %cst_9 = arith.constant dense<0.000000e+00> : vector<16x128xf32>
    %12 = tpu.matmul %9, %11, %cst_9 {dimension_numbers = #tpu.dot_dimension_numbers<[1], [0], [0], [1], [0, 0, 1, 1], [], []>} : vector<16x128xf32>, vector<128x128xf32>, vector<16x128xf32> -> vector<16x128xf32>
    %13 = arith.addf %8, %12 : vector<16x128xf32>
    %14 = vector.extract_strided_slice %2 {offsets = [32, 0], sizes = [16, 128], strides = [1, 1]} : vector<128x128xf32> to vector<16x128xf32>
    %c2 = arith.constant 2 : index
    %c0_10 = arith.constant 0 : index
    %c0_11 = arith.constant 0 : index
    %15 = vector.load %arg2[%c2, %c0_10, %c0_11] : memref<5x128x128xf32, #tpu.memory_space<vmem>>, vector<1x128x128xf32>
    %16 = vector.shape_cast %15 : vector<1x128x128xf32> to vector<128x128xf32>
    %cst_12 = arith.constant dense<0.000000e+00> : vector<16x128xf32>
    %17 = tpu.matmul %14, %16, %cst_12 {dimension_numbers = #tpu.dot_dimension_numbers<[1], [0], [0], [1], [0, 0, 1, 1], [], []>} : vector<16x128xf32>, vector<128x128xf32>, vector<16x128xf32> -> vector<16x128xf32>
    %18 = arith.addf %13, %17 : vector<16x128xf32>
    %19 = vector.extract_strided_slice %2 {offsets = [48, 0], sizes = [16, 128], strides = [1, 1]} : vector<128x128xf32> to vector<16x128xf32>
    %c3 = arith.constant 3 : index
    %c0_13 = arith.constant 0 : index
    %c0_14 = arith.constant 0 : index
    %20 = vector.load %arg2[%c3, %c0_13, %c0_14] : memref<5x128x128xf32, #tpu.memory_space<vmem>>, vector<1x128x128xf32>
    %21 = vector.shape_cast %20 : vector<1x128x128xf32> to vector<128x128xf32>
    %cst_15 = arith.constant dense<0.000000e+00> : vector<16x128xf32>
    %22 = tpu.matmul %19, %21, %cst_15 {dimension_numbers = #tpu.dot_dimension_numbers<[1], [0], [0], [1], [0, 0, 1, 1], [], []>} : vector<16x128xf32>, vector<128x128xf32>, vector<16x128xf32> -> vector<16x128xf32>
    %23 = arith.addf %18, %22 : vector<16x128xf32>
    %24 = vector.extract_strided_slice %2 {offsets = [64, 0], sizes = [16, 128], strides = [1, 1]} : vector<128x128xf32> to vector<16x128xf32>
    %c4 = arith.constant 4 : index
    %c0_16 = arith.constant 0 : index
    %c0_17 = arith.constant 0 : index
    %25 = vector.load %arg2[%c4, %c0_16, %c0_17] : memref<5x128x128xf32, #tpu.memory_space<vmem>>, vector<1x128x128xf32>
    %26 = vector.shape_cast %25 : vector<1x128x128xf32> to vector<128x128xf32>
    %cst_18 = arith.constant dense<0.000000e+00> : vector<16x128xf32>
    %27 = tpu.matmul %24, %26, %cst_18 {dimension_numbers = #tpu.dot_dimension_numbers<[1], [0], [0], [1], [0, 0, 1, 1], [], []>} : vector<16x128xf32>, vector<128x128xf32>, vector<16x128xf32> -> vector<16x128xf32>
    %28 = arith.addf %23, %27 : vector<16x128xf32>
    %c0_19 = arith.constant 0 : index
    %c0_20 = arith.constant 0 : index
    %29 = vector.load %arg4[%c0_19, %c0_20] : memref<16x1xf32, #tpu.memory_space<vmem>>, vector<16x1xf32>
    %30 = vector.broadcast %29 : vector<16x1xf32> to vector<16x128xf32>
    %31 = arith.addf %28, %30 : vector<16x128xf32>
    %cst_21 = arith.constant 0.000000e+00 : f32
    %32 = vector.broadcast %cst_21 : f32 to vector<16x128xf32>
    %33 = arith.cmpf ogt, %31, %32 : vector<16x128xf32>
    %34 = math.exp %31 : vector<16x128xf32>
    %cst_22 = arith.constant 1.000000e+00 : f32
    %35 = vector.broadcast %cst_22 : f32 to vector<16x128xf32>
    %36 = arith.subf %34, %35 : vector<16x128xf32>
    %37 = arith.select %33, %31, %36 : vector<16x128xi1>, vector<16x128xf32>
    %38 = vector.extract_strided_slice %2 {offsets = [112, 0], sizes = [16, 128], strides = [1, 1]} : vector<128x128xf32> to vector<16x128xf32>
    %39 = vector.extract_strided_slice %2 {offsets = [96, 0], sizes = [16, 128], strides = [1, 1]} : vector<128x128xf32> to vector<16x128xf32>
    %c0_23 = arith.constant 0 : index
    %c0_24 = arith.constant 0 : index
    %c0_25 = arith.constant 0 : index
    %40 = vector.load %arg3[%c0_23, %c0_24, %c0_25] : memref<1x128x128xf32, #tpu.memory_space<vmem>>, vector<1x128x128xf32>
    %41 = vector.shape_cast %40 : vector<1x128x128xf32> to vector<128x128xf32>
    %cst_26 = arith.constant dense<0.000000e+00> : vector<16x128xf32>
    %42 = tpu.matmul %39, %41, %cst_26 {dimension_numbers = #tpu.dot_dimension_numbers<[1], [0], [0], [1], [0, 0, 1, 1], [], []>} : vector<16x128xf32>, vector<128x128xf32>, vector<16x128xf32> -> vector<16x128xf32>
    %43 = arith.addf %38, %42 : vector<16x128xf32>
    %c0_27 = arith.constant 0 : index
    %c0_28 = arith.constant 0 : index
    %44 = vector.load %arg5[%c0_27, %c0_28] : memref<16x1xf32, #tpu.memory_space<vmem>>, vector<16x1xf32>
    %45 = vector.broadcast %44 : vector<16x1xf32> to vector<16x128xf32>
    %46 = arith.addf %43, %45 : vector<16x128xf32>
    %c0_29 = arith.constant 0 : index
    %c0_30 = arith.constant 0 : index
    %47 = vector.load %arg6[%c0_29, %c0_30] : memref<96x16xf32, #tpu.memory_space<vmem>>, vector<96x16xf32>
    %cst_31 = arith.constant dense<0.000000e+00> : vector<96x128xf32>
    %48 = tpu.matmul %47, %37, %cst_31 {dimension_numbers = #tpu.dot_dimension_numbers<[1], [0], [0], [1], [0, 0, 1, 1], [], []>} : vector<96x16xf32>, vector<16x128xf32>, vector<96x128xf32> -> vector<96x128xf32>
    %49 = vector.extract_strided_slice %48 {offsets = [80, 0], sizes = [16, 128], strides = [1, 1]} : vector<96x128xf32> to vector<16x128xf32>
    %50 = vector.extract_strided_slice %48 {offsets = [0, 0], sizes = [16, 128], strides = [1, 1]} : vector<96x128xf32> to vector<16x128xf32>
    %c0_32 = arith.constant 0 : index
    %c0_33 = arith.constant 0 : index
    %c0_34 = arith.constant 0 : index
    %51 = vector.load %arg7[%c0_32, %c0_33, %c0_34] : memref<5x128x128xf32, #tpu.memory_space<vmem>>, vector<1x128x128xf32>
    %52 = vector.shape_cast %51 : vector<1x128x128xf32> to vector<128x128xf32>
    %cst_35 = arith.constant dense<0.000000e+00> : vector<16x128xf32>
    %53 = tpu.matmul %50, %52, %cst_35 {dimension_numbers = #tpu.dot_dimension_numbers<[1], [0], [0], [1], [0, 0, 1, 1], [], []>} : vector<16x128xf32>, vector<128x128xf32>, vector<16x128xf32> -> vector<16x128xf32>
    %54 = arith.addf %49, %53 : vector<16x128xf32>
    %55 = vector.extract_strided_slice %48 {offsets = [16, 0], sizes = [16, 128], strides = [1, 1]} : vector<96x128xf32> to vector<16x128xf32>
    %c1_36 = arith.constant 1 : index
    %c0_37 = arith.constant 0 : index
    %c0_38 = arith.constant 0 : index
    %56 = vector.load %arg7[%c1_36, %c0_37, %c0_38] : memref<5x128x128xf32, #tpu.memory_space<vmem>>, vector<1x128x128xf32>
    %57 = vector.shape_cast %56 : vector<1x128x128xf32> to vector<128x128xf32>
    %cst_39 = arith.constant dense<0.000000e+00> : vector<16x128xf32>
    %58 = tpu.matmul %55, %57, %cst_39 {dimension_numbers = #tpu.dot_dimension_numbers<[1], [0], [0], [1], [0, 0, 1, 1], [], []>} : vector<16x128xf32>, vector<128x128xf32>, vector<16x128xf32> -> vector<16x128xf32>
    %59 = arith.addf %54, %58 : vector<16x128xf32>
    %60 = vector.extract_strided_slice %48 {offsets = [32, 0], sizes = [16, 128], strides = [1, 1]} : vector<96x128xf32> to vector<16x128xf32>
    %c2_40 = arith.constant 2 : index
    %c0_41 = arith.constant 0 : index
    %c0_42 = arith.constant 0 : index
    %61 = vector.load %arg7[%c2_40, %c0_41, %c0_42] : memref<5x128x128xf32, #tpu.memory_space<vmem>>, vector<1x128x128xf32>
    %62 = vector.shape_cast %61 : vector<1x128x128xf32> to vector<128x128xf32>
    %cst_43 = arith.constant dense<0.000000e+00> : vector<16x128xf32>
    %63 = tpu.matmul %60, %62, %cst_43 {dimension_numbers = #tpu.dot_dimension_numbers<[1], [0], [0], [1], [0, 0, 1, 1], [], []>} : vector<16x128xf32>, vector<128x128xf32>, vector<16x128xf32> -> vector<16x128xf32>
    %64 = arith.addf %59, %63 : vector<16x128xf32>
    %65 = vector.extract_strided_slice %48 {offsets = [48, 0], sizes = [16, 128], strides = [1, 1]} : vector<96x128xf32> to vector<16x128xf32>
    %c3_44 = arith.constant 3 : index
    %c0_45 = arith.constant 0 : index
    %c0_46 = arith.constant 0 : index
    %66 = vector.load %arg7[%c3_44, %c0_45, %c0_46] : memref<5x128x128xf32, #tpu.memory_space<vmem>>, vector<1x128x128xf32>
    %67 = vector.shape_cast %66 : vector<1x128x128xf32> to vector<128x128xf32>
    %cst_47 = arith.constant dense<0.000000e+00> : vector<16x128xf32>
    %68 = tpu.matmul %65, %67, %cst_47 {dimension_numbers = #tpu.dot_dimension_numbers<[1], [0], [0], [1], [0, 0, 1, 1], [], []>} : vector<16x128xf32>, vector<128x128xf32>, vector<16x128xf32> -> vector<16x128xf32>
    %69 = arith.addf %64, %68 : vector<16x128xf32>
    %70 = vector.extract_strided_slice %48 {offsets = [64, 0], sizes = [16, 128], strides = [1, 1]} : vector<96x128xf32> to vector<16x128xf32>
    %c4_48 = arith.constant 4 : index
    %c0_49 = arith.constant 0 : index
    %c0_50 = arith.constant 0 : index
    %71 = vector.load %arg7[%c4_48, %c0_49, %c0_50] : memref<5x128x128xf32, #tpu.memory_space<vmem>>, vector<1x128x128xf32>
    %72 = vector.shape_cast %71 : vector<1x128x128xf32> to vector<128x128xf32>
    %cst_51 = arith.constant dense<0.000000e+00> : vector<16x128xf32>
    %73 = tpu.matmul %70, %72, %cst_51 {dimension_numbers = #tpu.dot_dimension_numbers<[1], [0], [0], [1], [0, 0, 1, 1], [], []>} : vector<16x128xf32>, vector<128x128xf32>, vector<16x128xf32> -> vector<16x128xf32>
    %74 = arith.addf %69, %73 : vector<16x128xf32>
    %c0_52 = arith.constant 0 : index
    %c0_53 = arith.constant 0 : index
    %75 = vector.load %arg8[%c0_52, %c0_53] : memref<16x1xf32, #tpu.memory_space<vmem>>, vector<16x1xf32>
    %76 = vector.broadcast %75 : vector<16x1xf32> to vector<16x128xf32>
    %77 = arith.addf %74, %76 : vector<16x128xf32>
    %78 = arith.addf %77, %46 : vector<16x128xf32>
    %cst_54 = arith.constant 0.000000e+00 : f32
    %79 = vector.broadcast %cst_54 : f32 to vector<16x128xf32>
    %80 = arith.cmpf ogt, %78, %79 : vector<16x128xf32>
    %81 = math.exp %78 : vector<16x128xf32>
    %cst_55 = arith.constant 1.000000e+00 : f32
    %82 = vector.broadcast %cst_55 : f32 to vector<16x128xf32>
    %83 = arith.subf %81, %82 : vector<16x128xf32>
    %84 = arith.select %80, %78, %83 : vector<16x128xi1>, vector<16x128xf32>
    %c0_56 = arith.constant 0 : index
    %c0_57 = arith.constant 0 : index
    %85 = vector.load %arg9[%c0_56, %c0_57] : memref<16x128xf32, #tpu.memory_space<vmem>>, vector<16x128xf32>
    tpu.vector_store %arg9[%c0_56, %c0_57], %84 {strides = array<i32>} : memref<16x128xf32, #tpu.memory_space<vmem>>, vector<16x128xf32>,
    return
  }
}

</mosaic_0001>

<llo_original>
// kernel: tpu_custom_call.1
$region0: #{tpu_custom_call.1}
  #allocation0 [shape = 'u32[]', space=smem, size = 0x4, offset = 0x4, fixed_abs, tag = 'smem constant byte address 0x4 - core index']
  #allocation1 [shape = 'u32[72,128]{1,0:T(1,128)}', space=vmem, size = 0x9000, scoped, tag = 'internal scratch']
  %s0 = inlined_call_operand.vmem [shape: f32[8,128], index: 0, kind: input, shape index: {}]
  %s1 = inlined_call_operand.vmem [shape: f32[128,8], index: 1, kind: input, shape index: {}]
  %s2 = inlined_call_operand.hbm [shape: f32[5,128,128], index: 2, kind: input, shape index: {}]
  %s3 = inlined_call_operand.vmem [shape: f32[1,128,128], index: 3, kind: input, shape index: {}]
  %s4 = inlined_call_operand.vmem [shape: f32[16,1], index: 4, kind: input, shape index: {}]
  %s5 = inlined_call_operand.vmem [shape: f32[16,1], index: 5, kind: input, shape index: {}]
  %s6 = inlined_call_operand.vmem [shape: f32[96,16], index: 6, kind: input, shape index: {}]
  %s7 = inlined_call_operand.hbm [shape: f32[5,128,128], index: 7, kind: input, shape index: {}]
  %s8 = inlined_call_operand.vmem [shape: f32[16,1], index: 8, kind: input, shape index: {}]
  %s9 = inlined_call_operand.hbm [shape: f32[16,128], index: 9, kind: output, shape index: {}]
  %s10 = sld [smem:[#allocation0]]
  $region54: #{tpu_custom_call.1} parent=0
    _
  %s12 = ssub.s32 1, %s10
  %s13 = scalar_select 0, %s12, %s10
  $region1: #{tpu_custom_call.1} parent=0
    #allocation2 [shape = 'u8[327680]{0}', space=vmem, size = 0x50000, scoped, tag = 'input window, operand 2, single buffered']
    #allocation3 [shape = 's32[1]{0}', space=sflag, size = 0x4, scoped, tag = 'scoped memory for tpu_custom_call.1']
    #allocation4 [shape = 's32[1]{0}', space=sflag, size = 0x4, scoped, tag = 'scoped memory for tpu_custom_call.1']
    #allocation5 [shape = 'u8[327680]{0}', space=vmem, size = 0x50000, scoped, tag = 'input window, operand 7, single buffered']
    #allocation6 [shape = 's32[1]{0}', space=sflag, size = 0x4, scoped, tag = 'scoped memory for tpu_custom_call.1']
    #allocation7 [shape = 'u8[8192]{0}', space=vmem, size = 0x2000, scoped, tag = 'output window, operand 0, single buffered']
    %14 = vsyncpa [#allocation3], 0
    %15 = vsyncpa [#allocation6], 0
    %16 = vsyncpa [#allocation4], 0
    // Predicated region
    $region2: #{tpu_custom_call.1} parent=1 // pred_check
      _
    $region3: #{tpu_custom_call.1} parent=1 // pred_check_branch
      %18 = sbr.rel (0) target = $region5
    $region4: #{tpu_custom_call.1} parent=1 // pred_region
      _
    $region5: #{tpu_custom_call.1} parent=1 // pred_fallthru
      _
    // Predicated region
    $region6: #{tpu_custom_call.1} parent=1 // pred_check
      _
    $region7: #{tpu_custom_call.1} parent=1 // pred_check_branch
      %20 = sbr.rel (0) target = $region9
    $region8: #{tpu_custom_call.1} parent=1 // pred_region
      _
    $region9: #{tpu_custom_call.1} parent=1 // pred_fallthru
      _
    // Predicated region
    $region10: #{tpu_custom_call.1} parent=1 // pred_check
      _
    $region11: #{tpu_custom_call.1} parent=1 // pred_check_branch
      %22 = sbr.rel (0) target = $region13
    $region12: #{tpu_custom_call.1} parent=1 // pred_region
      %24 = vsyncadd [#allocation3], 0
      %s25 = sshll.u32 %s2, 4
      %s26 = int_to_ptr.hbm [resolvable:$true] %s25
      %s27 = sshll.u32 [#allocation2], 4
      %s28 = int_to_ptr.vmem [resolvable:$true] %s27
      %33 = dma.hbm_to_vmem [thread:$0]  %s26, 10240, %s28, [#allocation3], 128, 128, 8
    $region13: #{tpu_custom_call.1} parent=1 // pred_fallthru
      _
    // Predicated region
    $region14: #{tpu_custom_call.1} parent=1 // pred_check
      _
    $region15: #{tpu_custom_call.1} parent=1 // pred_check_branch
      %35 = sbr.rel (0) target = $region17
    $region16: #{tpu_custom_call.1} parent=1 // pred_region
      _
    $region17: #{tpu_custom_call.1} parent=1 // pred_fallthru
      _
    // Predicated region
    $region18: #{tpu_custom_call.1} parent=1 // pred_check
      _
    $region19: #{tpu_custom_call.1} parent=1 // pred_check_branch
      %37 = sbr.rel (0) target = $region21
    $region20: #{tpu_custom_call.1} parent=1 // pred_region
      _
    $region21: #{tpu_custom_call.1} parent=1 // pred_fallthru
      _
    // Predicated region
    $region22: #{tpu_custom_call.1} parent=1 // pred_check
      _
    $region23: #{tpu_custom_call.1} parent=1 // pred_check_branch
      %39 = sbr.rel (0) target = $region25
    $region24: #{tpu_custom_call.1} parent=1 // pred_region
      _
    $region25: #{tpu_custom_call.1} parent=1 // pred_fallthru
      _
    // Predicated region
    $region26: #{tpu_custom_call.1} parent=1 // pred_check
      _
    $region27: #{tpu_custom_call.1} parent=1 // pred_check_branch
      %41 = sbr.rel (0) target = $region29
    $region28: #{tpu_custom_call.1} parent=1 // pred_region
      _
    $region29: #{tpu_custom_call.1} parent=1 // pred_fallthru
      _
    // Predicated region
    $region30: #{tpu_custom_call.1} parent=1 // pred_check
      _
    $region31: #{tpu_custom_call.1} parent=1 // pred_check_branch
      %43 = sbr.rel (0) target = $region33
    $region32: #{tpu_custom_call.1} parent=1 // pred_region
      %45 = vsyncadd [#allocation6], 0
      %s46 = sshll.u32 %s7, 4
      %s47 = int_to_ptr.hbm [resolvable:$true] %s46
      %s48 = sshll.u32 [#allocation5], 4
      %s49 = int_to_ptr.vmem [resolvable:$true] %s48
      %54 = dma.hbm_to_vmem [thread:$0]  %s47, 10240, %s49, [#allocation6], 128, 128, 8
    $region33: #{tpu_custom_call.1} parent=1 // pred_fallthru
      _
    // Predicated region
    $region34: #{tpu_custom_call.1} parent=1 // pred_check
      _
    $region35: #{tpu_custom_call.1} parent=1 // pred_check_branch
      %56 = sbr.rel (0) target = $region37
    $region36: #{tpu_custom_call.1} parent=1 // pred_region
      _
    $region37: #{tpu_custom_call.1} parent=1 // pred_fallthru
      _
    // Predicated region
    $region38: #{tpu_custom_call.1} parent=1 // pred_check
      _
    $region39: #{tpu_custom_call.1} parent=1 // pred_check_branch
      %58 = sbr.rel (0) target = $region41
    $region40: #{tpu_custom_call.1} parent=1 // pred_region
      %60 = dma.done [#allocation3], 10240
    $region41: #{tpu_custom_call.1} parent=1 // pred_fallthru
      _
    // Predicated region
    $region42: #{tpu_custom_call.1} parent=1 // pred_check
      _
    $region43: #{tpu_custom_call.1} parent=1 // pred_check_branch
      %62 = sbr.rel (0) target = $region45
    $region44: #{tpu_custom_call.1} parent=1 // pred_region
      %64 = dma.done [#allocation6], 10240
    $region45: #{tpu_custom_call.1} parent=1 // pred_fallthru
      _
    %v65 = vld [vmem:[%s0] sm:$0xff]
    %v66 = vld [vmem:[%s1] sm:$0xff]
    %v67 = vld [vmem:[%s1 + $0x8] sm:$0xff]
    %v68 = vld [vmem:[%s1 + $0x10] sm:$0xff]
    %v69 = vld [vmem:[%s1 + $0x18] sm:$0xff]
    %v70 = vld [vmem:[%s1 + $0x20] sm:$0xff]
    %v71 = vld [vmem:[%s1 + $0x28] sm:$0xff]
    %v72 = vld [vmem:[%s1 + $0x30] sm:$0xff]
    %v73 = vld [vmem:[%s1 + $0x38] sm:$0xff]
    %v74 = vld [vmem:[%s1 + $0x40] sm:$0xff]
    %v75 = vld [vmem:[%s1 + $0x48] sm:$0xff]
    %v76 = vld [vmem:[%s1 + $0x50] sm:$0xff]
    %v77 = vld [vmem:[%s1 + $0x58] sm:$0xff]
    %v78 = vld [vmem:[%s1 + $0x60] sm:$0xff]
    %v79 = vld [vmem:[%s1 + $0x68] sm:$0xff]
    %v80 = vld [vmem:[%s1 + $0x70] sm:$0xff]
    %v81 = vld [vmem:[%s1 + $0x78] sm:$0xff]
    %vm82 = vcmask 64512
    %v84 = vsel %vm82, %v66, 0
    %v87 = vsel %vm82, %v67, 0
    %v90 = vsel %vm82, %v68, 0
    %v93 = vsel %vm82, %v69, 0
    %v96 = vsel %vm82, %v70, 0
    %v99 = vsel %vm82, %v71, 0
    %v102 = vsel %vm82, %v72, 0
    %v105 = vsel %vm82, %v73, 0
    %v108 = vsel %vm82, %v74, 0
    %v111 = vsel %vm82, %v75, 0
    %v114 = vsel %vm82, %v76, 0
    %v117 = vsel %vm82, %v77, 0
    %v120 = vsel %vm82, %v78, 0
    %v123 = vsel %vm82, %v79, 0
    %v126 = vsel %vm82, %v80, 0
    %v129 = vsel %vm82, %v81, 0
    %131 = vmatpush.msra.mxu0 0.0
    %132 = vmatpush.msra.mxu0 0.0
    %133 = vmatpush.msra.mxu0 0.0
    %134 = vmatpush.msra.mxu0 0.0
    %135 = vmatpush.msra.mxu0 0.0
    %136 = vmatpush.msra.mxu0 0.0
    %137 = vmatpush.msra.mxu0 0.0
    %138 = vmatpush.msra.mxu0 0.0
    %139 = vmatpush.msra.mxu0 0.0
    %140 = vmatpush.msra.mxu0 0.0
    %141 = vmatpush.msra.mxu0 0.0
    %142 = vmatpush.msra.mxu0 0.0
    %143 = vmatpush.msra.mxu0 0.0
    %144 = vmatpush.msra.mxu0 0.0
    %145 = vmatpush.msra.mxu0 0.0
    %146 = vmatpush.msra.mxu0 %v65
    %147 = vmatmul.f32.gmra.mxu0 %v84
    %v148 = vpop.f32.mrf.mxu0
    %v149 = vadd.f32 0.0, %v148
    %150 = vmatmul.f32.gmra.mxu0 %v87
    %v151 = vpop.f32.mrf.mxu0
    %v152 = vadd.f32 0.0, %v151
    %153 = vmatmul.f32.gmra.mxu0 %v90
    %v154 = vpop.f32.mrf.mxu0
    %v155 = vadd.f32 0.0, %v154
    %156 = vmatmul.f32.gmra.mxu0 %v93
    %v157 = vpop.f32.mrf.mxu0
    %v158 = vadd.f32 0.0, %v157
    %159 = vmatmul.f32.gmra.mxu0 %v96
    %v160 = vpop.f32.mrf.mxu0
    %v161 = vadd.f32 0.0, %v160
    %162 = vmatmul.f32.gmra.mxu0 %v99
    %v163 = vpop.f32.mrf.mxu0
    %v164 = vadd.f32 0.0, %v163
    %165 = vmatmul.f32.gmra.mxu0 %v102
    %v166 = vpop.f32.mrf.mxu0
    %v167 = vadd.f32 0.0, %v166
    %168 = vmatmul.f32.gmra.mxu0 %v105
    %v169 = vpop.f32.mrf.mxu0
    %v170 = vadd.f32 0.0, %v169
    %171 = vmatmul.f32.gmra.mxu0 %v108
    %v172 = vpop.f32.mrf.mxu0
    %v173 = vadd.f32 0.0, %v172
    %174 = vmatmul.f32.gmra.mxu0 %v111
    %v175 = vpop.f32.mrf.mxu0
    %v176 = vadd.f32 0.0, %v175
    %177 = vmatmul.f32.gmra.mxu0 %v114
    %v178 = vpop.f32.mrf.mxu0
    %v179 = vadd.f32 0.0, %v178
    %180 = vmatmul.f32.gmra.mxu0 %v117
    %v181 = vpop.f32.mrf.mxu0
    %v182 = vadd.f32 0.0, %v181
    %183 = vmatmul.f32.gmra.mxu0 %v120
    %v184 = vpop.f32.mrf.mxu0
    %v185 = vadd.f32 0.0, %v184
    %186 = vmatmul.f32.gmra.mxu0 %v123
    %v187 = vpop.f32.mrf.mxu0
    %v188 = vadd.f32 0.0, %v187
    %189 = vmatmul.f32.gmra.mxu0 %v126
    %v190 = vpop.f32.mrf.mxu0
    %v191 = vadd.f32 0.0, %v190
    %192 = vmatmul.f32.gmra.mxu0 %v129
    %v193 = vpop.f32.mrf.mxu0
    %v194 = vadd.f32 0.0, %v193
    %195 = vdwg.mxu0
    %v196 = vld [vmem:[#allocation2] sm:$0xff]
    %v197 = vld [vmem:[#allocation2 + $0x8] sm:$0xff]
    %v198 = vld [vmem:[#allocation2 + $0x10] sm:$0xff]
    %v199 = vld [vmem:[#allocation2 + $0x18] sm:$0xff]
    %v200 = vld [vmem:[#allocation2 + $0x20] sm:$0xff]
    %v201 = vld [vmem:[#allocation2 + $0x28] sm:$0xff]
    %v202 = vld [vmem:[#allocation2 + $0x30] sm:$0xff]
    %v203 = vld [vmem:[#allocation2 + $0x38] sm:$0xff]
    %v204 = vld [vmem:[#allocation2 + $0x40] sm:$0xff]
    %v205 = vld [vmem:[#allocation2 + $0x48] sm:$0xff]
    %v206 = vld [vmem:[#allocation2 + $0x50] sm:$0xff]
    %v207 = vld [vmem:[#allocation2 + $0x58] sm:$0xff]
    %v208 = vld [vmem:[#allocation2 + $0x60] sm:$0xff]
    %v209 = vld [vmem:[#allocation2 + $0x68] sm:$0xff]
    %v210 = vld [vmem:[#allocation2 + $0x70] sm:$0xff]
    %v211 = vld [vmem:[#allocation2 + $0x78] sm:$0xff]
    %212 = vmatpush.msra.mxu0 %v211
    %213 = vmatpush.msra.mxu0 %v210
    %214 = vmatpush.msra.mxu0 %v209
    %215 = vmatpush.msra.mxu0 %v208
    %216 = vmatpush.msra.mxu0 %v207
    %217 = vmatpush.msra.mxu0 %v206
    %218 = vmatpush.msra.mxu0 %v205
    %219 = vmatpush.msra.mxu0 %v204
    %220 = vmatpush.msra.mxu0 %v203
    %221 = vmatpush.msra.mxu0 %v202
    %222 = vmatpush.msra.mxu0 %v201
    %223 = vmatpush.msra.mxu0 %v200
    %224 = vmatpush.msra.mxu0 %v199
    %225 = vmatpush.msra.mxu0 %v198
    %226 = vmatpush.msra.mxu0 %v197
    %227 = vmatpush.msra.mxu0 %v196
    %228 = vmatmul.f32.gmra.mxu0 %v149
    %v229 = vpop.f32.mrf.mxu0
    %v230 = vadd.f32 0.0, %v229
    %231 = vmatmul.f32.gmra.mxu0 %v152
    %v232 = vpop.f32.mrf.mxu0
    %v233 = vadd.f32 0.0, %v232
    %234 = vdwg.mxu0
    %v235 = vadd.f32 %v179, %v230
    %v236 = vadd.f32 %v182, %v233
    %s237 = scalar_lea.vmem [#allocation2], 128
    %v238 = vld [vmem:[%s237] sm:$0xff]
    %v239 = vld [vmem:[%s237 + $0x8] sm:$0xff]
    %v240 = vld [vmem:[%s237 + $0x10] sm:$0xff]
    %v241 = vld [vmem:[%s237 + $0x18] sm:$0xff]
    %v242 = vld [vmem:[%s237 + $0x20] sm:$0xff]
    %v243 = vld [vmem:[%s237 + $0x28] sm:$0xff]
    %v244 = vld [vmem:[%s237 + $0x30] sm:$0xff]
    %v245 = vld [vmem:[%s237 + $0x38] sm:$0xff]
    %v246 = vld [vmem:[%s237 + $0x40] sm:$0xff]
    %v247 = vld [vmem:[%s237 + $0x48] sm:$0xff]
    %v248 = vld [vmem:[%s237 + $0x50] sm:$0xff]
    %v249 = vld [vmem:[%s237 + $0x58] sm:$0xff]
    %v250 = vld [vmem:[%s237 + $0x60] sm:$0xff]
    %v251 = vld [vmem:[%s237 + $0x68] sm:$0xff]
    %v252 = vld [vmem:[%s237 + $0x70] sm:$0xff]
    %v253 = vld [vmem:[%s237 + $0x78] sm:$0xff]
    %254 = vmatpush.msra.mxu0 %v253
    %255 = vmatpush.msra.mxu0 %v252
    %256 = vmatpush.msra.mxu0 %v251
    %257 = vmatpush.msra.mxu0 %v250
    %258 = vmatpush.msra.mxu0 %v249
    %259 = vmatpush.msra.mxu0 %v248
    %260 = vmatpush.msra.mxu0 %v247
    %261 = vmatpush.msra.mxu0 %v246
    %262 = vmatpush.msra.mxu0 %v245
    %263 = vmatpush.msra.mxu0 %v244
    %264 = vmatpush.msra.mxu0 %v243
    %265 = vmatpush.msra.mxu0 %v242
    %266 = vmatpush.msra.mxu0 %v241
    %267 = vmatpush.msra.mxu0 %v240
    %268 = vmatpush.msra.mxu0 %v239
    %269 = vmatpush.msra.mxu0 %v238
    %270 = vmatmul.f32.gmra.mxu0 %v155
    %v271 = vpop.f32.mrf.mxu0
    %v272 = vadd.f32 0.0, %v271
    %273 = vmatmul.f32.gmra.mxu0 %v158
    %v274 = vpop.f32.mrf.mxu0
    %v275 = vadd.f32 0.0, %v274
    %276 = vdwg.mxu0
    %v277 = vadd.f32 %v235, %v272
    %v278 = vadd.f32 %v236, %v275
    %s279 = scalar_lea.vmem [#allocation2], 256
    %v280 = vld [vmem:[%s279] sm:$0xff]
    %v281 = vld [vmem:[%s279 + $0x8] sm:$0xff]
    %v282 = vld [vmem:[%s279 + $0x10] sm:$0xff]
    %v283 = vld [vmem:[%s279 + $0x18] sm:$0xff]
    %v284 = vld [vmem:[%s279 + $0x20] sm:$0xff]
    %v285 = vld [vmem:[%s279 + $0x28] sm:$0xff]
    %v286 = vld [vmem:[%s279 + $0x30] sm:$0xff]
    %v287 = vld [vmem:[%s279 + $0x38] sm:$0xff]
    %v288 = vld [vmem:[%s279 + $0x40] sm:$0xff]
    %v289 = vld [vmem:[%s279 + $0x48] sm:$0xff]
    %v290 = vld [vmem:[%s279 + $0x50] sm:$0xff]
    %v291 = vld [vmem:[%s279 + $0x58] sm:$0xff]
    %v292 = vld [vmem:[%s279 + $0x60] sm:$0xff]
    %v293 = vld [vmem:[%s279 + $0x68] sm:$0xff]
    %v294 = vld [vmem:[%s279 + $0x70] sm:$0xff]
    %v295 = vld [vmem:[%s279 + $0x78] sm:$0xff]
    %296 = vmatpush.msra.mxu0 %v295
    %297 = vmatpush.msra.mxu0 %v294
    %298 = vmatpush.msra.mxu0 %v293
    %299 = vmatpush.msra.mxu0 %v292
    %300 = vmatpush.msra.mxu0 %v291
    %301 = vmatpush.msra.mxu0 %v290
    %302 = vmatpush.msra.mxu0 %v289
    %303 = vmatpush.msra.mxu0 %v288
    %304 = vmatpush.msra.mxu0 %v287
    %305 = vmatpush.msra.mxu0 %v286
    %306 = vmatpush.msra.mxu0 %v285
    %307 = vmatpush.msra.mxu0 %v284
    %308 = vmatpush.msra.mxu0 %v283
    %309 = vmatpush.msra.mxu0 %v282
    %310 = vmatpush.msra.mxu0 %v281
    %311 = vmatpush.msra.mxu0 %v280
    %312 = vmatmul.f32.gmra.mxu0 %v161
    %v313 = vpop.f32.mrf.mxu0
    %v314 = vadd.f32 0.0, %v313
    %315 = vmatmul.f32.gmra.mxu0 %v164
    %v316 = vpop.f32.mrf.mxu0
    %v317 = vadd.f32 0.0, %v316
    %318 = vdwg.mxu0
    %v319 = vadd.f32 %v277, %v314
    %v320 = vadd.f32 %v278, %v317
    %s321 = scalar_lea.vmem [#allocation2], 384
    %v322 = vld [vmem:[%s321] sm:$0xff]
    %v323 = vld [vmem:[%s321 + $0x8] sm:$0xff]
    %v324 = vld [vmem:[%s321 + $0x10] sm:$0xff]
    %v325 = vld [vmem:[%s321 + $0x18] sm:$0xff]
    %v326 = vld [vmem:[%s321 + $0x20] sm:$0xff]
    %v327 = vld [vmem:[%s321 + $0x28] sm:$0xff]
    %v328 = vld [vmem:[%s321 + $0x30] sm:$0xff]
    %v329 = vld [vmem:[%s321 + $0x38] sm:$0xff]
    %v330 = vld [vmem:[%s321 + $0x40] sm:$0xff]
    %v331 = vld [vmem:[%s321 + $0x48] sm:$0xff]
    %v332 = vld [vmem:[%s321 + $0x50] sm:$0xff]
    %v333 = vld [vmem:[%s321 + $0x58] sm:$0xff]
    %v334 = vld [vmem:[%s321 + $0x60] sm:$0xff]
    %v335 = vld [vmem:[%s321 + $0x68] sm:$0xff]
    %v336 = vld [vmem:[%s321 + $0x70] sm:$0xff]
    %v337 = vld [vmem:[%s321 + $0x78] sm:$0xff]
    %338 = vmatpush.msra.mxu0 %v337
    %339 = vmatpush.msra.mxu0 %v336
    %340 = vmatpush.msra.mxu0 %v335
    %341 = vmatpush.msra.mxu0 %v334
    %342 = vmatpush.msra.mxu0 %v333
    %343 = vmatpush.msra.mxu0 %v332
    %344 = vmatpush.msra.mxu0 %v331
    %345 = vmatpush.msra.mxu0 %v330
    %346 = vmatpush.msra.mxu0 %v329
    %347 = vmatpush.msra.mxu0 %v328
    %348 = vmatpush.msra.mxu0 %v327
    %349 = vmatpush.msra.mxu0 %v326
    %350 = vmatpush.msra.mxu0 %v325
    %351 = vmatpush.msra.mxu0 %v324
    %352 = vmatpush.msra.mxu0 %v323
    %353 = vmatpush.msra.mxu0 %v322
    %354 = vmatmul.f32.gmra.mxu0 %v167
    %v355 = vpop.f32.mrf.mxu0
    %v356 = vadd.f32 0.0, %v355
    %357 = vmatmul.f32.gmra.mxu0 %v170
    %v358 = vpop.f32.mrf.mxu0
    %v359 = vadd.f32 0.0, %v358
    %360 = vdwg.mxu0
    %v361 = vadd.f32 %v319, %v356
    %v362 = vadd.f32 %v320, %v359
    %s363 = scalar_lea.vmem [#allocation2], 512
    %v364 = vld [vmem:[%s363] sm:$0xff]
    %v365 = vld [vmem:[%s363 + $0x8] sm:$0xff]
    %v366 = vld [vmem:[%s363 + $0x10] sm:$0xff]
    %v367 = vld [vmem:[%s363 + $0x18] sm:$0xff]
    %v368 = vld [vmem:[%s363 + $0x20] sm:$0xff]
    %v369 = vld [vmem:[%s363 + $0x28] sm:$0xff]
    %v370 = vld [vmem:[%s363 + $0x30] sm:$0xff]
    %v371 = vld [vmem:[%s363 + $0x38] sm:$0xff]
    %v372 = vld [vmem:[%s363 + $0x40] sm:$0xff]
    %v373 = vld [vmem:[%s363 + $0x48] sm:$0xff]
    %v374 = vld [vmem:[%s363 + $0x50] sm:$0xff]
    %v375 = vld [vmem:[%s363 + $0x58] sm:$0xff]
    %v376 = vld [vmem:[%s363 + $0x60] sm:$0xff]
    %v377 = vld [vmem:[%s363 + $0x68] sm:$0xff]
    %v378 = vld [vmem:[%s363 + $0x70] sm:$0xff]
    %v379 = vld [vmem:[%s363 + $0x78] sm:$0xff]
    %380 = vmatpush.msra.mxu0 %v379
    %381 = vmatpush.msra.mxu0 %v378
    %382 = vmatpush.msra.mxu0 %v377
    %383 = vmatpush.msra.mxu0 %v376
    %384 = vmatpush.msra.mxu0 %v375
    %385 = vmatpush.msra.mxu0 %v374
    %386 = vmatpush.msra.mxu0 %v373
    %387 = vmatpush.msra.mxu0 %v372
    %388 = vmatpush.msra.mxu0 %v371
    %389 = vmatpush.msra.mxu0 %v370
    %390 = vmatpush.msra.mxu0 %v369
    %391 = vmatpush.msra.mxu0 %v368
    %392 = vmatpush.msra.mxu0 %v367
    %393 = vmatpush.msra.mxu0 %v366
    %394 = vmatpush.msra.mxu0 %v365
    %395 = vmatpush.msra.mxu0 %v364
    %396 = vmatmul.f32.gmra.mxu0 %v173
    %v397 = vpop.f32.mrf.mxu0
    %v398 = vadd.f32 0.0, %v397
    %399 = vmatmul.f32.gmra.mxu0 %v176
    %v400 = vpop.f32.mrf.mxu0
    %v401 = vadd.f32 0.0, %v400
    %402 = vdwg.mxu0
    %v403 = vadd.f32 %v361, %v398
    %v404 = vadd.f32 %v362, %v401
    %v405 = vld [vmem:[%s4] sm:$0xff]
    %v406 = vld [vmem:[%s4 + $0x8] sm:$0xff]
    %408 = vset.pattern.permute.xlu0 0
    %409 = vperm.xlu0 %408, %v405
    %v410 = vpop.permute.xlu0 %409
    %413 = vset.pattern.permute.xlu0 0
    %414 = vperm.xlu0 %413, %v406
    %v415 = vpop.permute.xlu0 %414
    %v417 = vadd.f32 %v403, %v410
    %v418 = vadd.f32 %v404, %v415
    %vm419 = vcmp.gt.f32.partialorder %v417, 0.0
    %vm420 = vcmp.gt.f32.partialorder %v418, 0.0
    %v421 = vmul.f32 %v417, 1.442695
    %v422 = vpow.pop %v421
    %v423 = vmul.f32 %v418, 1.442695
    %v424 = vpow.pop %v423
    %v425 = vsub.f32 %v422, 1.0
    %v426 = vsub.f32 %v424, 1.0
    %v427 = vsel %vm419, %v417, %v425
    %v428 = vsel %vm420, %v418, %v426
    %v429 = vld [vmem:[%s3] sm:$0xff]
    %v430 = vld [vmem:[%s3 + $0x8] sm:$0xff]
    %v431 = vld [vmem:[%s3 + $0x10] sm:$0xff]
    %v432 = vld [vmem:[%s3 + $0x18] sm:$0xff]
    %v433 = vld [vmem:[%s3 + $0x20] sm:$0xff]
    %v434 = vld [vmem:[%s3 + $0x28] sm:$0xff]
    %v435 = vld [vmem:[%s3 + $0x30] sm:$0xff]
    %v436 = vld [vmem:[%s3 + $0x38] sm:$0xff]
    %v437 = vld [vmem:[%s3 + $0x40] sm:$0xff]
    %v438 = vld [vmem:[%s3 + $0x48] sm:$0xff]
    %v439 = vld [vmem:[%s3 + $0x50] sm:$0xff]
    %v440 = vld [vmem:[%s3 + $0x58] sm:$0xff]
    %v441 = vld [vmem:[%s3 + $0x60] sm:$0xff]
    %v442 = vld [vmem:[%s3 + $0x68] sm:$0xff]
    %v443 = vld [vmem:[%s3 + $0x70] sm:$0xff]
    %v444 = vld [vmem:[%s3 + $0x78] sm:$0xff]
    %445 = vmatpush.msra.mxu0 %v444
    %446 = vmatpush.msra.mxu0 %v443
    %447 = vmatpush.msra.mxu0 %v442
    %448 = vmatpush.msra.mxu0 %v441
    %449 = vmatpush.msra.mxu0 %v440
    %450 = vmatpush.msra.mxu0 %v439
    %451 = vmatpush.msra.mxu0 %v438
    %452 = vmatpush.msra.mxu0 %v437
    %453 = vmatpush.msra.mxu0 %v436
    %454 = vmatpush.msra.mxu0 %v435
    %455 = vmatpush.msra.mxu0 %v434
    %456 = vmatpush.msra.mxu0 %v433
    %457 = vmatpush.msra.mxu0 %v432
    %458 = vmatpush.msra.mxu0 %v431
    %459 = vmatpush.msra.mxu0 %v430
    %460 = vmatpush.msra.mxu0 %v429
    %461 = vmatmul.f32.gmra.mxu0 %v185
    %v462 = vpop.f32.mrf.mxu0
    %v463 = vadd.f32 0.0, %v462
    %464 = vmatmul.f32.gmra.mxu0 %v188
    %v465 = vpop.f32.mrf.mxu0
    %v466 = vadd.f32 0.0, %v465
    %467 = vdwg.mxu0
    %v468 = vadd.f32 %v191, %v463
    %v469 = vadd.f32 %v194, %v466
    %v470 = vld [vmem:[%s5] sm:$0xff]
    %v471 = vld [vmem:[%s5 + $0x8] sm:$0xff]
    %473 = vset.pattern.permute.xlu0 0
    %474 = vperm.xlu0 %473, %v470
    %v475 = vpop.permute.xlu0 %474
    %478 = vset.pattern.permute.xlu0 0
    %479 = vperm.xlu0 %478, %v471
    %v480 = vpop.permute.xlu0 %479
    %v482 = vadd.f32 %v468, %v475
    %v483 = vadd.f32 %v469, %v480
    %v484 = vld [vmem:[%s6] sm:$0xff]
    %v485 = vld [vmem:[%s6 + $0x8] sm:$0xff]
    %v486 = vld [vmem:[%s6 + $0x10] sm:$0xff]
    %v487 = vld [vmem:[%s6 + $0x18] sm:$0xff]
    %v488 = vld [vmem:[%s6 + $0x20] sm:$0xff]
    %v489 = vld [vmem:[%s6 + $0x28] sm:$0xff]
    %v490 = vld [vmem:[%s6 + $0x30] sm:$0xff]
    %v491 = vld [vmem:[%s6 + $0x38] sm:$0xff]
    %v492 = vld [vmem:[%s6 + $0x40] sm:$0xff]
    %v493 = vld [vmem:[%s6 + $0x48] sm:$0xff]
    %v494 = vld [vmem:[%s6 + $0x50] sm:$0xff]
    %v495 = vld [vmem:[%s6 + $0x58] sm:$0xff]
    %vm496 = vcmask 130048
    %v498 = vsel %vm496, %v484, 0
    %v501 = vsel %vm496, %v485, 0
    %v504 = vsel %vm496, %v486, 0
    %v507 = vsel %vm496, %v487, 0
    %v510 = vsel %vm496, %v488, 0
    %v513 = vsel %vm496, %v489, 0
    %v516 = vsel %vm496, %v490, 0
    %v519 = vsel %vm496, %v491, 0
    %v522 = vsel %vm496, %v492, 0
    %v525 = vsel %vm496, %v493, 0
    %v528 = vsel %vm496, %v494, 0
    %v531 = vsel %vm496, %v495, 0
    %533 = vmatpush.msra.mxu0 0.0
    %534 = vmatpush.msra.mxu0 0.0
    %535 = vmatpush.msra.mxu0 0.0
    %536 = vmatpush.msra.mxu0 0.0
    %537 = vmatpush.msra.mxu0 0.0
    %538 = vmatpush.msra.mxu0 0.0
    %539 = vmatpush.msra.mxu0 0.0
    %540 = vmatpush.msra.mxu0 0.0
    %541 = vmatpush.msra.mxu0 0.0
    %542 = vmatpush.msra.mxu0 0.0
    %543 = vmatpush.msra.mxu0 0.0
    %544 = vmatpush.msra.mxu0 0.0
    %545 = vmatpush.msra.mxu0 0.0
    %546 = vmatpush.msra.mxu0 0.0
    %547 = vmatpush.msra.mxu0 %v428
    %548 = vmatpush.msra.mxu0 %v427
    %549 = vmatmul.f32.gmra.mxu0 %v498
    %v550 = vpop.f32.mrf.mxu0
    %v551 = vadd.f32 0.0, %v550
    %552 = vmatmul.f32.gmra.mxu0 %v501
    %v553 = vpop.f32.mrf.mxu0
    %v554 = vadd.f32 0.0, %v553
    %555 = vmatmul.f32.gmra.mxu0 %v504
    %v556 = vpop.f32.mrf.mxu0
    %v557 = vadd.f32 0.0, %v556
    %558 = vmatmul.f32.gmra.mxu0 %v507
    %v559 = vpop.f32.mrf.mxu0
    %v560 = vadd.f32 0.0, %v559
    %561 = vmatmul.f32.gmra.mxu0 %v510
    %v562 = vpop.f32.mrf.mxu0
    %v563 = vadd.f32 0.0, %v562
    %564 = vmatmul.f32.gmra.mxu0 %v513
    %v565 = vpop.f32.mrf.mxu0
    %v566 = vadd.f32 0.0, %v565
    %567 = vmatmul.f32.gmra.mxu0 %v516
    %v568 = vpop.f32.mrf.mxu0
    %v569 = vadd.f32 0.0, %v568
    %570 = vmatmul.f32.gmra.mxu0 %v519
    %v571 = vpop.f32.mrf.mxu0
    %v572 = vadd.f32 0.0, %v571
    %573 = vmatmul.f32.gmra.mxu0 %v522
    %v574 = vpop.f32.mrf.mxu0
    %v575 = vadd.f32 0.0, %v574
    %576 = vmatmul.f32.gmra.mxu0 %v525
    %v577 = vpop.f32.mrf.mxu0
    %v578 = vadd.f32 0.0, %v577
    %579 = vmatmul.f32.gmra.mxu0 %v528
    %v580 = vpop.f32.mrf.mxu0
    %v581 = vadd.f32 0.0, %v580
    %582 = vmatmul.f32.gmra.mxu0 %v531
    %v583 = vpop.f32.mrf.mxu0
    %v584 = vadd.f32 0.0, %v583
    %585 = vdwg.mxu0
    %v586 = vld [vmem:[#allocation5] sm:$0xff]
    %v587 = vld [vmem:[#allocation5 + $0x8] sm:$0xff]
    %v588 = vld [vmem:[#allocation5 + $0x10] sm:$0xff]
    %v589 = vld [vmem:[#allocation5 + $0x18] sm:$0xff]
    %v590 = vld [vmem:[#allocation5 + $0x20] sm:$0xff]
    %v591 = vld [vmem:[#allocation5 + $0x28] sm:$0xff]
    %v592 = vld [vmem:[#allocation5 + $0x30] sm:$0xff]
    %v593 = vld [vmem:[#allocation5 + $0x38] sm:$0xff]
    %v594 = vld [vmem:[#allocation5 + $0x40] sm:$0xff]
    %v595 = vld [vmem:[#allocation5 + $0x48] sm:$0xff]
    %v596 = vld [vmem:[#allocation5 + $0x50] sm:$0xff]
    %v597 = vld [vmem:[#allocation5 + $0x58] sm:$0xff]
    %v598 = vld [vmem:[#allocation5 + $0x60] sm:$0xff]
    %v599 = vld [vmem:[#allocation5 + $0x68] sm:$0xff]
    %v600 = vld [vmem:[#allocation5 + $0x70] sm:$0xff]
    %v601 = vld [vmem:[#allocation5 + $0x78] sm:$0xff]
    %602 = vmatpush.msra.mxu0 %v601
    %603 = vmatpush.msra.mxu0 %v600
    %604 = vmatpush.msra.mxu0 %v599
    %605 = vmatpush.msra.mxu0 %v598
    %606 = vmatpush.msra.mxu0 %v597
    %607 = vmatpush.msra.mxu0 %v596
    %608 = vmatpush.msra.mxu0 %v595
    %609 = vmatpush.msra.mxu0 %v594
    %610 = vmatpush.msra.mxu0 %v593
    %611 = vmatpush.msra.mxu0 %v592
    %612 = vmatpush.msra.mxu0 %v591
    %613 = vmatpush.msra.mxu0 %v590
    %614 = vmatpush.msra.mxu0 %v589
    %615 = vmatpush.msra.mxu0 %v588
    %616 = vmatpush.msra.mxu0 %v587
    %617 = vmatpush.msra.mxu0 %v586
    %618 = vmatmul.f32.gmra.mxu0 %v551
    %v619 = vpop.f32.mrf.mxu0
    %v620 = vadd.f32 0.0, %v619
    %621 = vmatmul.f32.gmra.mxu0 %v554
    %v622 = vpop.f32.mrf.mxu0
    %v623 = vadd.f32 0.0, %v622
    %624 = vdwg.mxu0
    %v625 = vadd.f32 %v581, %v620
    %v626 = vadd.f32 %v584, %v623
    %s627 = scalar_lea.vmem [#allocation5], 128
    %v628 = vld [vmem:[%s627] sm:$0xff]
    %v629 = vld [vmem:[%s627 + $0x8] sm:$0xff]
    %v630 = vld [vmem:[%s627 + $0x10] sm:$0xff]
    %v631 = vld [vmem:[%s627 + $0x18] sm:$0xff]
    %v632 = vld [vmem:[%s627 + $0x20] sm:$0xff]
    %v633 = vld [vmem:[%s627 + $0x28] sm:$0xff]
    %v634 = vld [vmem:[%s627 + $0x30] sm:$0xff]
    %v635 = vld [vmem:[%s627 + $0x38] sm:$0xff]
    %v636 = vld [vmem:[%s627 + $0x40] sm:$0xff]
    %v637 = vld [vmem:[%s627 + $0x48] sm:$0xff]
    %v638 = vld [vmem:[%s627 + $0x50] sm:$0xff]
    %v639 = vld [vmem:[%s627 + $0x58] sm:$0xff]
    %v640 = vld [vmem:[%s627 + $0x60] sm:$0xff]
    %v641 = vld [vmem:[%s627 + $0x68] sm:$0xff]
    %v642 = vld [vmem:[%s627 + $0x70] sm:$0xff]
    %v643 = vld [vmem:[%s627 + $0x78] sm:$0xff]
    %644 = vmatpush.msra.mxu0 %v643
    %645 = vmatpush.msra.mxu0 %v642
    %646 = vmatpush.msra.mxu0 %v641
    %647 = vmatpush.msra.mxu0 %v640
    %648 = vmatpush.msra.mxu0 %v639
    %649 = vmatpush.msra.mxu0 %v638
    %650 = vmatpush.msra.mxu0 %v637
    %651 = vmatpush.msra.mxu0 %v636
    %652 = vmatpush.msra.mxu0 %v635
    %653 = vmatpush.msra.mxu0 %v634
    %654 = vmatpush.msra.mxu0 %v633
    %655 = vmatpush.msra.mxu0 %v632
    %656 = vmatpush.msra.mxu0 %v631
    %657 = vmatpush.msra.mxu0 %v630
    %658 = vmatpush.msra.mxu0 %v629
    %659 = vmatpush.msra.mxu0 %v628
    %660 = vmatmul.f32.gmra.mxu0 %v557
    %v661 = vpop.f32.mrf.mxu0
    %v662 = vadd.f32 0.0, %v661
    %663 = vmatmul.f32.gmra.mxu0 %v560
    %v664 = vpop.f32.mrf.mxu0
    %v665 = vadd.f32 0.0, %v664
    %666 = vdwg.mxu0
    %v667 = vadd.f32 %v625, %v662
    %v668 = vadd.f32 %v626, %v665
    %s669 = scalar_lea.vmem [#allocation5], 256
    %v670 = vld [vmem:[%s669] sm:$0xff]
    %v671 = vld [vmem:[%s669 + $0x8] sm:$0xff]
    %v672 = vld [vmem:[%s669 + $0x10] sm:$0xff]
    %v673 = vld [vmem:[%s669 + $0x18] sm:$0xff]
    %v674 = vld [vmem:[%s669 + $0x20] sm:$0xff]
    %v675 = vld [vmem:[%s669 + $0x28] sm:$0xff]
    %v676 = vld [vmem:[%s669 + $0x30] sm:$0xff]
    %v677 = vld [vmem:[%s669 + $0x38] sm:$0xff]
    %v678 = vld [vmem:[%s669 + $0x40] sm:$0xff]
    %v679 = vld [vmem:[%s669 + $0x48] sm:$0xff]
    %v680 = vld [vmem:[%s669 + $0x50] sm:$0xff]
    %v681 = vld [vmem:[%s669 + $0x58] sm:$0xff]
    %v682 = vld [vmem:[%s669 + $0x60] sm:$0xff]
    %v683 = vld [vmem:[%s669 + $0x68] sm:$0xff]
    %v684 = vld [vmem:[%s669 + $0x70] sm:$0xff]
    %v685 = vld [vmem:[%s669 + $0x78] sm:$0xff]
    %686 = vmatpush.msra.mxu0 %v685
    %687 = vmatpush.msra.mxu0 %v684
    %688 = vmatpush.msra.mxu0 %v683
    %689 = vmatpush.msra.mxu0 %v682
    %690 = vmatpush.msra.mxu0 %v681
    %691 = vmatpush.msra.mxu0 %v680
    %692 = vmatpush.msra.mxu0 %v679
    %693 = vmatpush.msra.mxu0 %v678
    %694 = vmatpush.msra.mxu0 %v677
    %695 = vmatpush.msra.mxu0 %v676
    %696 = vmatpush.msra.mxu0 %v675
    %697 = vmatpush.msra.mxu0 %v674
    %698 = vmatpush.msra.mxu0 %v673
    %699 = vmatpush.msra.mxu0 %v672
    %700 = vmatpush.msra.mxu0 %v671
    %701 = vmatpush.msra.mxu0 %v670
    %702 = vmatmul.f32.gmra.mxu0 %v563
    %v703 = vpop.f32.mrf.mxu0
    %v704 = vadd.f32 0.0, %v703
    %705 = vmatmul.f32.gmra.mxu0 %v566
    %v706 = vpop.f32.mrf.mxu0
    %v707 = vadd.f32 0.0, %v706
    %708 = vdwg.mxu0
    %v709 = vadd.f32 %v667, %v704
    %v710 = vadd.f32 %v668, %v707
    %s711 = scalar_lea.vmem [#allocation5], 384
    %v712 = vld [vmem:[%s711] sm:$0xff]
    %v713 = vld [vmem:[%s711 + $0x8] sm:$0xff]
    %v714 = vld [vmem:[%s711 + $0x10] sm:$0xff]
    %v715 = vld [vmem:[%s711 + $0x18] sm:$0xff]
    %v716 = vld [vmem:[%s711 + $0x20] sm:$0xff]
    %v717 = vld [vmem:[%s711 + $0x28] sm:$0xff]
    %v718 = vld [vmem:[%s711 + $0x30] sm:$0xff]
    %v719 = vld [vmem:[%s711 + $0x38] sm:$0xff]
    %v720 = vld [vmem:[%s711 + $0x40] sm:$0xff]
    %v721 = vld [vmem:[%s711 + $0x48] sm:$0xff]
    %v722 = vld [vmem:[%s711 + $0x50] sm:$0xff]
    %v723 = vld [vmem:[%s711 + $0x58] sm:$0xff]
    %v724 = vld [vmem:[%s711 + $0x60] sm:$0xff]
    %v725 = vld [vmem:[%s711 + $0x68] sm:$0xff]
    %v726 = vld [vmem:[%s711 + $0x70] sm:$0xff]
    %v727 = vld [vmem:[%s711 + $0x78] sm:$0xff]
    %728 = vmatpush.msra.mxu0 %v727
    %729 = vmatpush.msra.mxu0 %v726
    %730 = vmatpush.msra.mxu0 %v725
    %731 = vmatpush.msra.mxu0 %v724
    %732 = vmatpush.msra.mxu0 %v723
    %733 = vmatpush.msra.mxu0 %v722
    %734 = vmatpush.msra.mxu0 %v721
    %735 = vmatpush.msra.mxu0 %v720
    %736 = vmatpush.msra.mxu0 %v719
    %737 = vmatpush.msra.mxu0 %v718
    %738 = vmatpush.msra.mxu0 %v717
    %739 = vmatpush.msra.mxu0 %v716
    %740 = vmatpush.msra.mxu0 %v715
    %741 = vmatpush.msra.mxu0 %v714
    %742 = vmatpush.msra.mxu0 %v713
    %743 = vmatpush.msra.mxu0 %v712
    %744 = vmatmul.f32.gmra.mxu0 %v569
    %v745 = vpop.f32.mrf.mxu0
    %v746 = vadd.f32 0.0, %v745
    %747 = vmatmul.f32.gmra.mxu0 %v572
    %v748 = vpop.f32.mrf.mxu0
    %v749 = vadd.f32 0.0, %v748
    %750 = vdwg.mxu0
    %v751 = vadd.f32 %v709, %v746
    %v752 = vadd.f32 %v710, %v749
    %s753 = scalar_lea.vmem [#allocation5], 512
    %v754 = vld [vmem:[%s753] sm:$0xff]
    %v755 = vld [vmem:[%s753 + $0x8] sm:$0xff]
    %v756 = vld [vmem:[%s753 + $0x10] sm:$0xff]
    %v757 = vld [vmem:[%s753 + $0x18] sm:$0xff]
    %v758 = vld [vmem:[%s753 + $0x20] sm:$0xff]
    %v759 = vld [vmem:[%s753 + $0x28] sm:$0xff]
    %v760 = vld [vmem:[%s753 + $0x30] sm:$0xff]
    %v761 = vld [vmem:[%s753 + $0x38] sm:$0xff]
    %v762 = vld [vmem:[%s753 + $0x40] sm:$0xff]
    %v763 = vld [vmem:[%s753 + $0x48] sm:$0xff]
    %v764 = vld [vmem:[%s753 + $0x50] sm:$0xff]
    %v765 = vld [vmem:[%s753 + $0x58] sm:$0xff]
    %v766 = vld [vmem:[%s753 + $0x60] sm:$0xff]
    %v767 = vld [vmem:[%s753 + $0x68] sm:$0xff]
    %v768 = vld [vmem:[%s753 + $0x70] sm:$0xff]
    %v769 = vld [vmem:[%s753 + $0x78] sm:$0xff]
    %770 = vmatpush.msra.mxu0 %v769
    %771 = vmatpush.msra.mxu0 %v768
    %772 = vmatpush.msra.mxu0 %v767
    %773 = vmatpush.msra.mxu0 %v766
    %774 = vmatpush.msra.mxu0 %v765
    %775 = vmatpush.msra.mxu0 %v764
    %776 = vmatpush.msra.mxu0 %v763
    %777 = vmatpush.msra.mxu0 %v762
    %778 = vmatpush.msra.mxu0 %v761
    %779 = vmatpush.msra.mxu0 %v760
    %780 = vmatpush.msra.mxu0 %v759
    %781 = vmatpush.msra.mxu0 %v758
    %782 = vmatpush.msra.mxu0 %v757
    %783 = vmatpush.msra.mxu0 %v756
    %784 = vmatpush.msra.mxu0 %v755
    %785 = vmatpush.msra.mxu0 %v754
    %786 = vmatmul.f32.gmra.mxu0 %v575
    %v787 = vpop.f32.mrf.mxu0
    %v788 = vadd.f32 0.0, %v787
    %789 = vmatmul.f32.gmra.mxu0 %v578
    %v790 = vpop.f32.mrf.mxu0
    %v791 = vadd.f32 0.0, %v790
    %792 = vdwg.mxu0
    %v793 = vadd.f32 %v751, %v788
    %v794 = vadd.f32 %v752, %v791
    %v795 = vld [vmem:[%s8] sm:$0xff]
    %v796 = vld [vmem:[%s8 + $0x8] sm:$0xff]
    %798 = vset.pattern.permute.xlu0 0
    %799 = vperm.xlu0 %798, %v795
    %v800 = vpop.permute.xlu0 %799
    %803 = vset.pattern.permute.xlu0 0
    %804 = vperm.xlu0 %803, %v796
    %v805 = vpop.permute.xlu0 %804
    %v807 = vadd.f32 %v793, %v800
    %v808 = vadd.f32 %v794, %v805
    %v809 = vadd.f32 %v807, %v482
    %v810 = vadd.f32 %v808, %v483
    %vm811 = vcmp.gt.f32.partialorder %v809, 0.0
    %vm812 = vcmp.gt.f32.partialorder %v810, 0.0
    %v813 = vmul.f32 %v809, 1.442695
    %v814 = vpow.pop %v813
    %v815 = vmul.f32 %v810, 1.442695
    %v816 = vpow.pop %v815
    %v817 = vsub.f32 %v814, 1.0
    %v818 = vsub.f32 %v816, 1.0
    %v819 = vsel %vm811, %v809, %v817
    %v820 = vsel %vm812, %v810, %v818
    %821 = vst [vmem:[#allocation7] sm:$0xff] %v819
    %822 = vst [vmem:[#allocation7 + $0x8] sm:$0xff] %v820
    // Predicated region
    $region46: #{tpu_custom_call.1} parent=1 // pred_check
      _
    $region47: #{tpu_custom_call.1} parent=1 // pred_check_branch
      %824 = sbr.rel (0) target = $region49
    $region48: #{tpu_custom_call.1} parent=1 // pred_region
      %826 = vsyncadd [#allocation4], 0
      %s827 = sshll.u32 [#allocation7], 4
      %s828 = int_to_ptr.vmem [resolvable:$true] %s827
      %s829 = sshll.u32 %s9, 4
      %s830 = int_to_ptr.hbm [resolvable:$true] %s829
      %835 = dma.vmem_to_hbm [thread:$0]  %s828, 256, %s830, [#allocation4], 128, 128, 8
    $region49: #{tpu_custom_call.1} parent=1 // pred_fallthru
      _
    // Predicated region
    $region50: #{tpu_custom_call.1} parent=1 // pred_check
      _
    $region51: #{tpu_custom_call.1} parent=1 // pred_check_branch
      %837 = sbr.rel (0) target = $region53
    $region52: #{tpu_custom_call.1} parent=1 // pred_region
      %839 = dma.done [#allocation4], 256
    $region53: #{tpu_custom_call.1} parent=1 // pred_fallthru
      _
    %840 = vsyncpa [#allocation3], 1
    %841 = vsyncpa [#allocation6], 1
    %842 = vsyncpa [#allocation4], 1

</llo_original>
